<compile_context>
chip_gen: v7x
topology: tpu7x:2x2x1
jax: 0.10.0
libtpu: 0.0.40
codegen_flags: <defaults>
</compile_context>

<pallas_src>
import functools

import jax
import jax.numpy as jnp
from jax.experimental import pallas as pl
from jax.experimental.pallas import tpu as pltpu


def _fused_block_kernel(x_ref, w1_ref, s1_ref, b1_ref, w2_ref, s2_ref, b2_ref,
                        o_ref, pad1_ref, pad2_ref, *, H):
    """One grid step = one image, both conv layers fused.

    x_ref:    (1, H, W*Cin)        f32   input rows, lane = w*Cin + ci
    w1_ref:   (3, W*Cin, W*Cmid)   bf16  block-banded weight, one slab per kh
    s1/b1:    (1, W*Cmid)          f32   folded BN scale/bias, tiled along W
    w2_ref:   (3, W*Cmid, W*Cout)  bf16
    s2/b2:    (1, W*Cout)          f32
    o_ref:    (H, W*Cout)                lane-dense output rows
    pad1_ref: (H+2, W*Cin)         bf16  scratch with H-halo only
    pad2_ref: (H+2, W*Cmid)        bf16  scratch with H-halo only
    """
    # Zero ONLY the 2 halo rows of each pad buffer (the interior is fully
    # overwritten every step).  Done per step, not once at program_id==0, so
    # correctness does not depend on grid-step -> core assignment (megacore).
    z1 = jnp.zeros((1, pad1_ref.shape[1]), pad1_ref.dtype)
    z2 = jnp.zeros((1, pad2_ref.shape[1]), pad2_ref.dtype)
    pad1_ref[0:1, :] = z1
    pad1_ref[H + 1:H + 2, :] = z1
    pad2_ref[0:1, :] = z2
    pad2_ref[H + 1:H + 2, :] = z2

    def conv_rows(pad_ref, w_ref):
        # 3 accumulated MXU matmuls (one per kernel row kh); K = W*C lanes,
        # N = W*Cout lanes, f32 accumulation.
        acc = jnp.dot(pad_ref[0:H, :], w_ref[0],
                      preferred_element_type=jnp.float32)
        acc = acc + jnp.dot(pad_ref[1:H + 1, :], w_ref[1],
                            preferred_element_type=jnp.float32)
        acc = acc + jnp.dot(pad_ref[2:H + 2, :], w_ref[2],
                            preferred_element_type=jnp.float32)
        return acc

    # ---- Layer 1: stage interior rows (wide lane-dense store, single bf16 cast)
    pad1_ref[1:H + 1, :] = x_ref[0].astype(pad1_ref.dtype)
    y1 = conv_rows(pad1_ref, w1_ref)
    y1 = jnp.maximum(y1 * s1_ref[...] + b1_ref[...], 0.0)      # fused BN+ReLU, f32

    # ---- Layer 2: intermediate stays in VMEM (bf16), never touches HBM.
    pad2_ref[1:H + 1, :] = y1.astype(pad2_ref.dtype)
    y2 = conv_rows(pad2_ref, w2_ref)
    y2 = jnp.maximum(y2 * s2_ref[...] + b2_ref[...], 0.0)

    o_ref[...] = y2.astype(o_ref.dtype)                        # (H, W*Cout), 128-lane store


def _band_weight(w, W, dtype=jnp.bfloat16):
    """Fold the kw taps + zero padding along W into a block-banded matrix.

    w: (3, 3, Cin, Cout) in (kh, kw, cin, cout) order.
    Returns wb of shape (3, W*Cin, W*Cout) with
      wb[kh, wp*Cin + ci, wo*Cout + co] = w[kh, kw, ci, co]
        where kw = wp - wo + 1, iff 0 <= kw <= 2  (out-of-range => zero pad).
    """
    _, _, cin, cout = w.shape
    band = jnp.zeros((3, W, cin, W, cout), jnp.float32)
    for kw in range(3):
        # mask[wp, wo] = 1  iff  wp == wo + kw - 1
        mask = jnp.eye(W, W, k=-(kw - 1), dtype=jnp.float32)
        band = band + (mask[None, :, None, :, None] *
                       w[:, kw].astype(jnp.float32)[:, None, :, None, :])
    return band.reshape(3, W * cin, W * cout).astype(dtype)


def basic_conv_block(x_nchw, params, *, eps=1e-5):
    """BasicConvBlock forward (eval mode). x_nchw: (N, Cin, H, W); returns NCHW."""
    assert len(params) == 2, "fused kernel implements the default num_convs=2"
    N, Cin, H, W = x_nchw.shape
    Cmid = params[0]["w"].shape[-1]
    Cout = params[1]["w"].shape[-1]
    assert params[0]["w"].shape == (3, 3, Cin, Cmid)
    assert params[1]["w"].shape == (3, 3, Cmid, Cout)

    # Layout plumbing (plain JAX, free HBM reshuffle): NCHW -> (N, H, W*Cin).
    x_rows = jnp.transpose(x_nchw, (0, 2, 3, 1)).reshape(N, H, W * Cin)

    def fold_bn(p, cout):
        s = (p["gamma"] / jnp.sqrt(p["var"] + eps)).astype(jnp.float32)
        b = (p["beta"] - p["mean"] * s).astype(jnp.float32)
        # Tile per-channel scale/bias along W to match lane layout w*C + c.
        return (jnp.tile(s, W).reshape(1, W * cout),
                jnp.tile(b, W).reshape(1, W * cout))

    w1 = _band_weight(params[0]["w"], W)          # (3, W*Cin,  W*Cmid) bf16
    w2 = _band_weight(params[1]["w"], W)          # (3, W*Cmid, W*Cout) bf16
    s1, b1 = fold_bn(params[0], Cmid)
    s2, b2 = fold_bn(params[1], Cout)

    kernel = functools.partial(_fused_block_kernel, H=H)

    # Explicit VMEM budget: scratch + double-buffered blocks, with headroom,
    # capped below the v7x 64 MiB physical VMEM.
    weight_bytes = 2 * 3 * W * W * (Cin * Cmid + Cmid * Cout)     # bf16 banded weights
    block_bytes = H * W * (Cin + Cout) * 4                        # x + out blocks (f32)
    scratch_bytes = (H + 2) * W * (Cin + Cmid) * 2                # bf16 pad scratches
    bn_bytes = 4 * W * (Cmid + Cout) * 4
    vmem_limit = int(min(48 * 2**20,
                         max(16 * 2**20,
                             4 * (weight_bytes + 2 * block_bytes
                                  + scratch_bytes + bn_bytes))))

    out2d = pl.pallas_call(
        kernel,
        out_shape=jax.ShapeDtypeStruct((N * H, W * Cout), x_nchw.dtype),
        grid=(N,),                 # one image per step -> >=2 parallel steps (v7x 2 TCs)
        in_specs=[
            pl.BlockSpec((1, H, W * Cin), lambda b: (b, 0, 0)),
            pl.BlockSpec((3, W * Cin, W * Cmid), lambda b: (0, 0, 0)),
            pl.BlockSpec((1, W * Cmid), lambda b: (0, 0)),
            pl.BlockSpec((1, W * Cmid), lambda b: (0, 0)),
            pl.BlockSpec((3, W * Cmid, W * Cout), lambda b: (0, 0, 0)),
            pl.BlockSpec((1, W * Cout), lambda b: (0, 0)),
            pl.BlockSpec((1, W * Cout), lambda b: (0, 0)),
        ],
        out_specs=pl.BlockSpec((H, W * Cout), lambda b: (b, 0)),
        scratch_shapes=[
            pltpu.VMEM((H + 2, W * Cin), jnp.bfloat16),
            pltpu.VMEM((H + 2, W * Cmid), jnp.bfloat16),
        ],
        compiler_params=pltpu.CompilerParams(
            dimension_semantics=("parallel",),
            vmem_limit_bytes=vmem_limit),
    )(x_rows, w1, s1, b1, w2, s2, b2)

    out = out2d.reshape(N, H, W, Cout)
    return jnp.transpose(out, (0, 3, 1, 2))      # back to NCHW


def _reference(x_nchw, params, eps=1e-5):
    """Pure-JAX reference (lax.conv); mirrors the kernel's bf16 MXU operands."""
    x = x_nchw.astype(jnp.float32)
    for layer in params:
        w = jnp.transpose(layer["w"], (3, 2, 0, 1))           # OIHW
        xin = x.astype(jnp.bfloat16).astype(jnp.float32)      # kernel feeds MXU bf16
        wf = w.astype(jnp.bfloat16).astype(jnp.float32)
        y = jax.lax.conv_general_dilated(
            xin, wf, window_strides=(1, 1), padding=((1, 1), (1, 1)),
            dimension_numbers=("NCHW", "OIHW", "NCHW"),
            precision=jax.lax.Precision.HIGHEST)
        s = layer["gamma"] / jnp.sqrt(layer["var"] + eps)
        b = layer["beta"] - layer["mean"] * s
        x = jnp.maximum(y * s[None, :, None, None] + b[None, :, None, None], 0.0)
    return x


def make_params(key, in_channels, out_channels, num_convs=2):
    params = []
    cin = in_channels
    for i in range(num_convs):
        k = jax.random.fold_in(key, i)
        kw_, kg, kb, km, kv = jax.random.split(k, 5)
        params.append(dict(
            w=jax.random.normal(kw_, (3, 3, cin, out_channels), jnp.float32) * 0.1,
            gamma=1.0 + 0.1 * jax.random.normal(kg, (out_channels,), jnp.float32),
            beta=0.1 * jax.random.normal(kb, (out_channels,), jnp.float32),
            mean=0.1 * jax.random.normal(km, (out_channels,), jnp.float32),
            var=jnp.abs(jax.random.normal(kv, (out_channels,), jnp.float32)) * 0.1 + 1.0,
        ))
        cin = out_channels
    return params


if __name__ == "__main__":
    key = jax.random.PRNGKey(0)
    kx, kp = jax.random.split(key)

    N, Cin, H, W = 2, 4, 16, 16
    Cout = 8
    x = jax.random.normal(kx, (N, Cin, H, W), jnp.float32)   # PyTorch-style NCHW
    params = make_params(kp, Cin, Cout, num_convs=2)

    out = jax.block_until_ready(basic_conv_block(x, params))
    ref = jax.block_until_ready(_reference(x, params))

    assert out.shape == (N, Cout, H, W), out.shape
    max_err = float(jnp.max(jnp.abs(out - ref)))
    assert max_err < 3e-3, f"max abs err {max_err}"

    print("KERNEL_OK")
</pallas_src>

<mosaic_0001>
module attributes {stable_mosaic.version = 11 : i64} {
  func.func @_fused_block_kernel(%arg0: i32, %arg1: memref<1x16x64xf32, #tpu.memory_space<vmem>>, %arg2: memref<3x64x128xbf16, #tpu.memory_space<vmem>>, %arg3: memref<1x128xf32, #tpu.memory_space<vmem>>, %arg4: memref<1x128xf32, #tpu.memory_space<vmem>>, %arg5: memref<3x128x128xbf16, #tpu.memory_space<vmem>>, %arg6: memref<1x128xf32, #tpu.memory_space<vmem>>, %arg7: memref<1x128xf32, #tpu.memory_space<vmem>>, %arg8: memref<16x128xf32, #tpu.memory_space<vmem>>, %arg9: memref<18x64xbf16, #tpu.memory_space<vmem>>, %arg10: memref<18x128xbf16, #tpu.memory_space<vmem>>) attributes {dimension_semantics = [#tpu.dimension_semantics<parallel>], iteration_bounds = array<i64: 2>, scalar_prefetch = 0 : i64, scratch_operands = 2 : i64, tpu.core_type = #tpu.core_type<tc>, window_params = [{transform_indices = @transform_0, window_bounds = array<i64: 1, 16, 64>}, {pipeline_mode = #tpu.pipeline_mode<synchronous>, transform_indices = @transform_1, window_bounds = array<i64: 3, 64, 128>}, {pipeline_mode = #tpu.pipeline_mode<synchronous>, transform_indices = @transform_2, window_bounds = array<i64: 1, 128>}, {pipeline_mode = #tpu.pipeline_mode<synchronous>, transform_indices = @transform_3, window_bounds = array<i64: 1, 128>}, {pipeline_mode = #tpu.pipeline_mode<synchronous>, transform_indices = @transform_4, window_bounds = array<i64: 3, 128, 128>}, {pipeline_mode = #tpu.pipeline_mode<synchronous>, transform_indices = @transform_5, window_bounds = array<i64: 1, 128>}, {pipeline_mode = #tpu.pipeline_mode<synchronous>, transform_indices = @transform_6, window_bounds = array<i64: 1, 128>}, {transform_indices = @transform_7, window_bounds = array<i64: 16, 128>}]} {
    %cst = arith.constant 0.000000e+00 : bf16
    %0 = vector.broadcast %cst : bf16 to vector<1x64xbf16>
    %cst_0 = arith.constant 0.000000e+00 : bf16
    %1 = vector.broadcast %cst_0 : bf16 to vector<1x128xbf16>
    %c0 = arith.constant 0 : index
    %c0_1 = arith.constant 0 : index
    %2 = vector.load %arg9[%c0, %c0_1] : memref<18x64xbf16, #tpu.memory_space<vmem>>, vector<1x64xbf16>
    tpu.vector_store %arg9[%c0, %c0_1], %0 {strides = array<i32>} : memref<18x64xbf16, #tpu.memory_space<vmem>>, vector<1x64xbf16>,
    %c17 = arith.constant 17 : index
    %c0_2 = arith.constant 0 : index
    %3 = vector.load %arg9[%c17, %c0_2] : memref<18x64xbf16, #tpu.memory_space<vmem>>, vector<1x64xbf16>
    tpu.vector_store %arg9[%c17, %c0_2], %0 {strides = array<i32>} : memref<18x64xbf16, #tpu.memory_space<vmem>>, vector<1x64xbf16>,
    %c0_3 = arith.constant 0 : index
    %c0_4 = arith.constant 0 : index
    %4 = vector.load %arg10[%c0_3, %c0_4] : memref<18x128xbf16, #tpu.memory_space<vmem>>, vector<1x128xbf16>
    tpu.vector_store %arg10[%c0_3, %c0_4], %1 {strides = array<i32>} : memref<18x128xbf16, #tpu.memory_space<vmem>>, vector<1x128xbf16>,
    %c17_5 = arith.constant 17 : index
    %c0_6 = arith.constant 0 : index
    %5 = vector.load %arg10[%c17_5, %c0_6] : memref<18x128xbf16, #tpu.memory_space<vmem>>, vector<1x128xbf16>
    tpu.vector_store %arg10[%c17_5, %c0_6], %1 {strides = array<i32>} : memref<18x128xbf16, #tpu.memory_space<vmem>>, vector<1x128xbf16>,
    %c0_7 = arith.constant 0 : index
    %c0_8 = arith.constant 0 : index
    %c0_9 = arith.constant 0 : index
    %6 = vector.load %arg1[%c0_7, %c0_8, %c0_9] : memref<1x16x64xf32, #tpu.memory_space<vmem>>, vector<1x16x64xf32>
    %7 = vector.shape_cast %6 : vector<1x16x64xf32> to vector<16x64xf32>
    %8 = arith.truncf %7 : vector<16x64xf32> to vector<16x64xbf16>
    %c1 = arith.constant 1 : index
    %c0_10 = arith.constant 0 : index
    %9 = vector.load %arg9[%c1, %c0_10] : memref<18x64xbf16, #tpu.memory_space<vmem>>, vector<16x64xbf16>
    tpu.vector_store %arg9[%c1, %c0_10], %8 {strides = array<i32>} : memref<18x64xbf16, #tpu.memory_space<vmem>>, vector<16x64xbf16>,
    %c0_11 = arith.constant 0 : index
    %c0_12 = arith.constant 0 : index
    %10 = vector.load %arg9[%c0_11, %c0_12] : memref<18x64xbf16, #tpu.memory_space<vmem>>, vector<16x64xbf16>
    %c0_13 = arith.constant 0 : index
    %c0_14 = arith.constant 0 : index
    %c0_15 = arith.constant 0 : index
    %11 = vector.load %arg2[%c0_13, %c0_14, %c0_15] : memref<3x64x128xbf16, #tpu.memory_space<vmem>>, vector<1x64x128xbf16>
    %12 = vector.shape_cast %11 : vector<1x64x128xbf16> to vector<64x128xbf16>
    %cst_16 = arith.constant dense<0.000000e+00> : vector<16x128xf32>
    %13 = tpu.matmul %10, %12, %cst_16 {dimension_numbers = #tpu.dot_dimension_numbers<[1], [0], [0], [1], [0, 0, 1, 1], [], []>} : vector<16x64xbf16>, vector<64x128xbf16>, vector<16x128xf32> -> vector<16x128xf32>
    %c1_17 = arith.constant 1 : index
    %c0_18 = arith.constant 0 : index
    %14 = vector.load %arg9[%c1_17, %c0_18] : memref<18x64xbf16, #tpu.memory_space<vmem>>, vector<16x64xbf16>
    %c1_19 = arith.constant 1 : index
    %c0_20 = arith.constant 0 : index
    %c0_21 = arith.constant 0 : index
    %15 = vector.load %arg2[%c1_19, %c0_20, %c0_21] : memref<3x64x128xbf16, #tpu.memory_space<vmem>>, vector<1x64x128xbf16>
    %16 = vector.shape_cast %15 : vector<1x64x128xbf16> to vector<64x128xbf16>
    %cst_22 = arith.constant dense<0.000000e+00> : vector<16x128xf32>
    %17 = tpu.matmul %14, %16, %cst_22 {dimension_numbers = #tpu.dot_dimension_numbers<[1], [0], [0], [1], [0, 0, 1, 1], [], []>} : vector<16x64xbf16>, vector<64x128xbf16>, vector<16x128xf32> -> vector<16x128xf32>
    %18 = arith.addf %13, %17 : vector<16x128xf32>
    %c2 = arith.constant 2 : index
    %c0_23 = arith.constant 0 : index
    %19 = vector.load %arg9[%c2, %c0_23] : memref<18x64xbf16, #tpu.memory_space<vmem>>, vector<16x64xbf16>
    %c2_24 = arith.constant 2 : index
    %c0_25 = arith.constant 0 : index
    %c0_26 = arith.constant 0 : index
    %20 = vector.load %arg2[%c2_24, %c0_25, %c0_26] : memref<3x64x128xbf16, #tpu.memory_space<vmem>>, vector<1x64x128xbf16>
    %21 = vector.shape_cast %20 : vector<1x64x128xbf16> to vector<64x128xbf16>
    %cst_27 = arith.constant dense<0.000000e+00> : vector<16x128xf32>
    %22 = tpu.matmul %19, %21, %cst_27 {dimension_numbers = #tpu.dot_dimension_numbers<[1], [0], [0], [1], [0, 0, 1, 1], [], []>} : vector<16x64xbf16>, vector<64x128xbf16>, vector<16x128xf32> -> vector<16x128xf32>
    %23 = arith.addf %18, %22 : vector<16x128xf32>
    %c0_28 = arith.constant 0 : index
    %c0_29 = arith.constant 0 : index
    %24 = vector.load %arg3[%c0_28, %c0_29] : memref<1x128xf32, #tpu.memory_space<vmem>>, vector<1x128xf32>
    %25 = vector.broadcast %24 : vector<1x128xf32> to vector<16x128xf32>
    %26 = arith.mulf %23, %25 : vector<16x128xf32>
    %c0_30 = arith.constant 0 : index
    %c0_31 = arith.constant 0 : index
    %27 = vector.load %arg4[%c0_30, %c0_31] : memref<1x128xf32, #tpu.memory_space<vmem>>, vector<1x128xf32>
    %28 = vector.broadcast %27 : vector<1x128xf32> to vector<16x128xf32>
    %29 = arith.addf %26, %28 : vector<16x128xf32>
    %cst_32 = arith.constant 0.000000e+00 : f32
    %30 = vector.broadcast %cst_32 : f32 to vector<16x128xf32>
    %31 = arith.maximumf %29, %30 : vector<16x128xf32>
    %32 = arith.truncf %31 : vector<16x128xf32> to vector<16x128xbf16>
    %c1_33 = arith.constant 1 : index
    %c0_34 = arith.constant 0 : index
    %33 = vector.load %arg10[%c1_33, %c0_34] : memref<18x128xbf16, #tpu.memory_space<vmem>>, vector<16x128xbf16>
    tpu.vector_store %arg10[%c1_33, %c0_34], %32 {strides = array<i32>} : memref<18x128xbf16, #tpu.memory_space<vmem>>, vector<16x128xbf16>,
    %c0_35 = arith.constant 0 : index
    %c0_36 = arith.constant 0 : index
    %34 = vector.load %arg10[%c0_35, %c0_36] : memref<18x128xbf16, #tpu.memory_space<vmem>>, vector<16x128xbf16>
    %c0_37 = arith.constant 0 : index
    %c0_38 = arith.constant 0 : index
    %c0_39 = arith.constant 0 : index
    %35 = vector.load %arg5[%c0_37, %c0_38, %c0_39] : memref<3x128x128xbf16, #tpu.memory_space<vmem>>, vector<1x128x128xbf16>
    %36 = vector.shape_cast %35 : vector<1x128x128xbf16> to vector<128x128xbf16>
    %cst_40 = arith.constant dense<0.000000e+00> : vector<16x128xf32>
    %37 = tpu.matmul %34, %36, %cst_40 {dimension_numbers = #tpu.dot_dimension_numbers<[1], [0], [0], [1], [0, 0, 1, 1], [], []>} : vector<16x128xbf16>, vector<128x128xbf16>, vector<16x128xf32> -> vector<16x128xf32>
    %c1_41 = arith.constant 1 : index
    %c0_42 = arith.constant 0 : index
    %38 = vector.load %arg10[%c1_41, %c0_42] : memref<18x128xbf16, #tpu.memory_space<vmem>>, vector<16x128xbf16>
    %c1_43 = arith.constant 1 : index
    %c0_44 = arith.constant 0 : index
    %c0_45 = arith.constant 0 : index
    %39 = vector.load %arg5[%c1_43, %c0_44, %c0_45] : memref<3x128x128xbf16, #tpu.memory_space<vmem>>, vector<1x128x128xbf16>
    %40 = vector.shape_cast %39 : vector<1x128x128xbf16> to vector<128x128xbf16>
    %cst_46 = arith.constant dense<0.000000e+00> : vector<16x128xf32>
    %41 = tpu.matmul %38, %40, %cst_46 {dimension_numbers = #tpu.dot_dimension_numbers<[1], [0], [0], [1], [0, 0, 1, 1], [], []>} : vector<16x128xbf16>, vector<128x128xbf16>, vector<16x128xf32> -> vector<16x128xf32>
    %42 = arith.addf %37, %41 : vector<16x128xf32>
    %c2_47 = arith.constant 2 : index
    %c0_48 = arith.constant 0 : index
    %43 = vector.load %arg10[%c2_47, %c0_48] : memref<18x128xbf16, #tpu.memory_space<vmem>>, vector<16x128xbf16>
    %c2_49 = arith.constant 2 : index
    %c0_50 = arith.constant 0 : index
    %c0_51 = arith.constant 0 : index
    %44 = vector.load %arg5[%c2_49, %c0_50, %c0_51] : memref<3x128x128xbf16, #tpu.memory_space<vmem>>, vector<1x128x128xbf16>
    %45 = vector.shape_cast %44 : vector<1x128x128xbf16> to vector<128x128xbf16>
    %cst_52 = arith.constant dense<0.000000e+00> : vector<16x128xf32>
    %46 = tpu.matmul %43, %45, %cst_52 {dimension_numbers = #tpu.dot_dimension_numbers<[1], [0], [0], [1], [0, 0, 1, 1], [], []>} : vector<16x128xbf16>, vector<128x128xbf16>, vector<16x128xf32> -> vector<16x128xf32>
    %47 = arith.addf %42, %46 : vector<16x128xf32>
    %c0_53 = arith.constant 0 : index
    %c0_54 = arith.constant 0 : index
    %48 = vector.load %arg6[%c0_53, %c0_54] : memref<1x128xf32, #tpu.memory_space<vmem>>, vector<1x128xf32>
    %49 = vector.broadcast %48 : vector<1x128xf32> to vector<16x128xf32>
    %50 = arith.mulf %47, %49 : vector<16x128xf32>
    %c0_55 = arith.constant 0 : index
    %c0_56 = arith.constant 0 : index
    %51 = vector.load %arg7[%c0_55, %c0_56] : memref<1x128xf32, #tpu.memory_space<vmem>>, vector<1x128xf32>
    %52 = vector.broadcast %51 : vector<1x128xf32> to vector<16x128xf32>
    %53 = arith.addf %50, %52 : vector<16x128xf32>
    %cst_57 = arith.constant 0.000000e+00 : f32
    %54 = vector.broadcast %cst_57 : f32 to vector<16x128xf32>
    %55 = arith.maximumf %53, %54 : vector<16x128xf32>
    %c0_58 = arith.constant 0 : index
    %c0_59 = arith.constant 0 : index
    %56 = vector.load %arg8[%c0_58, %c0_59] : memref<16x128xf32, #tpu.memory_space<vmem>>, vector<16x128xf32>
    tpu.vector_store %arg8[%c0_58, %c0_59], %55 {strides = array<i32>} : memref<16x128xf32, #tpu.memory_space<vmem>>, vector<16x128xf32>,
    return
  }
  func.func @transform_0(%arg0: i32) -> (i32, i32, i32) {
    %c0_i32 = arith.constant 0 : i32
    %c0_i32_0 = arith.constant 0 : i32
    %c0_i32_1 = arith.constant 0 : i32
    return %arg0, %c0_i32, %c0_i32_0 : i32, i32, i32
  }
  func.func @transform_1(%arg0: i32) -> (i32, i32, i32) {
    %c0_i32 = arith.constant 0 : i32
    %c0_i32_0 = arith.constant 0 : i32
    %c0_i32_1 = arith.constant 0 : i32
    %c0_i32_2 = arith.constant 0 : i32
    return %c0_i32, %c0_i32_0, %c0_i32_1 : i32, i32, i32
  }
  func.func @transform_2(%arg0: i32) -> (i32, i32) {
    %c0_i32 = arith.constant 0 : i32
    %c0_i32_0 = arith.constant 0 : i32
    %c0_i32_1 = arith.constant 0 : i32
    return %c0_i32, %c0_i32_0 : i32, i32
  }
  func.func @transform_3(%arg0: i32) -> (i32, i32) {
    %c0_i32 = arith.constant 0 : i32
    %c0_i32_0 = arith.constant 0 : i32
    %c0_i32_1 = arith.constant 0 : i32
    return %c0_i32, %c0_i32_0 : i32, i32
  }
  func.func @transform_4(%arg0: i32) -> (i32, i32, i32) {
    %c0_i32 = arith.constant 0 : i32
    %c0_i32_0 = arith.constant 0 : i32
    %c0_i32_1 = arith.constant 0 : i32
    %c0_i32_2 = arith.constant 0 : i32
    return %c0_i32, %c0_i32_0, %c0_i32_1 : i32, i32, i32
  }
  func.func @transform_5(%arg0: i32) -> (i32, i32) {
    %c0_i32 = arith.constant 0 : i32
    %c0_i32_0 = arith.constant 0 : i32
    %c0_i32_1 = arith.constant 0 : i32
    return %c0_i32, %c0_i32_0 : i32, i32
  }
  func.func @transform_6(%arg0: i32) -> (i32, i32) {
    %c0_i32 = arith.constant 0 : i32
    %c0_i32_0 = arith.constant 0 : i32
    %c0_i32_1 = arith.constant 0 : i32
    return %c0_i32, %c0_i32_0 : i32, i32
  }
  func.func @transform_7(%arg0: i32) -> (i32, i32) {
    %c0_i32 = arith.constant 0 : i32
    %c0_i32_0 = arith.constant 0 : i32
    return %arg0, %c0_i32 : i32, i32
  }
}

</mosaic_0001>

<llo_original>
// kernel: tpu_custom_call.1
$region0: #{tpu_custom_call.1}
  #allocation0 [shape = 'u32[]', space=smem, size = 0x4, offset = 0x4, fixed_abs, tag = 'smem constant byte address 0x4 - core index']
  #allocation1 [shape = 'u32[144,128]{1,0:T(1,128)}', space=vmem, size = 0x12000, scoped, tag = 'internal scratch']
  #allocation2 [shape = 'bf16[18,64]{1,0:T(8,128)(2,1)}', space=vmem, size = 0x1800, scoped, tag = 'scratch operand']
  #allocation3 [shape = 'bf16[18,128]{1,0:T(8,128)(2,1)}', space=vmem, size = 0x1800, scoped, tag = 'scratch operand']
  %s0 = inlined_call_operand.hbm [shape: f32[2,16,64], index: 0, kind: input, shape index: {}]
  %s1 = inlined_call_operand.hbm [shape: bf16[3,64,128], index: 1, kind: input, shape index: {}]
  %s2 = inlined_call_operand.vmem [shape: f32[1,128], index: 2, kind: input, shape index: {}]
  %s3 = inlined_call_operand.vmem [shape: f32[1,128], index: 3, kind: input, shape index: {}]
  %s4 = inlined_call_operand.hbm [shape: bf16[3,128,128], index: 4, kind: input, shape index: {}]
  %s5 = inlined_call_operand.vmem [shape: f32[1,128], index: 5, kind: input, shape index: {}]
  %s6 = inlined_call_operand.vmem [shape: f32[1,128], index: 6, kind: input, shape index: {}]
  %s7 = inlined_call_operand.hbm [shape: f32[32,128], index: 7, kind: output, shape index: {}]
  %s8 = sld [smem:[#allocation0]]
  $region73: #{tpu_custom_call.1} parent=0
    _
  %s10 = ssub.s32 1, %s8
  %s11 = scalar_select 0, %s10, %s8
  $region1: #{tpu_custom_call.1} parent=0
    #allocation4 [shape = 'u8[16384]{0}', space=vmem, size = 0x4000, scoped, tag = 'input window, operand 0']
    #allocation5 [shape = 's32[2]{0}', space=sflag, size = 0x8, scoped, tag = 'scoped memory for tpu_custom_call.1']
    #allocation6 [shape = 's32[2]{0}', space=sflag, size = 0x8, scoped, tag = 'scoped memory for tpu_custom_call.1']
    #allocation7 [shape = 'u8[49152]{0}', space=vmem, size = 0xc000, scoped, tag = 'input window, operand 1, single buffered']
    #allocation8 [shape = 's32[1]{0}', space=sflag, size = 0x4, scoped, tag = 'scoped memory for tpu_custom_call.1']
    #allocation9 [shape = 'u8[98304]{0}', space=vmem, size = 0x18000, scoped, tag = 'input window, operand 4, single buffered']
    #allocation10 [shape = 'u8[16384]{0}', space=vmem, size = 0x4000, scoped, tag = 'output window, operand 0']
    %12 = vsyncpa [#allocation5], 0
    %s13 = scalar_lea.sflag [#allocation5], 1
    %14 = vsyncpa %s13, 0
    %15 = vsyncpa [#allocation8], 0
    %16 = vsyncpa [#allocation6], 0
    %s17 = scalar_lea.sflag [#allocation6], 1
    %18 = vsyncpa %s17, 0
    loop: start=0, step=1, limit=4
    $region2: #{tpu_custom_call.1} parent=1 // loop_pre_header
      _
    $region3: #{tpu_custom_call.1} parent=1 // loop_header
      %s20 = sphi 0, %s24
      %p21 = scmp.ge.s32.totalorder %s20, 4
      %s30 = sphi 0, %s32
      %s33 = sphi 0, %s30
      %s34 = sphi 0, %s33
      %s50 = sphi 0, %s34
      %s54 = sphi 0, %s54
      %s56 = sphi 0, %s54
      %s57 = sphi 0, %s56
      %s71 = sphi 0, %s57
      %s75 = sphi 0, %s75
      %s77 = sphi 0, %s75
      %s78 = sphi 0, %s77
      %s92 = sphi 0, %s78
      %s96 = sphi 0, %s96
      %s98 = sphi 0, %s96
      %s99 = sphi 0, %s98
      %s113 = sphi 0, %s99
      %s117 = sphi 0, %s117
      %s119 = sphi 0, %s117
      %s120 = sphi 0, %s119
      %s134 = sphi 0, %s120
      %s138 = sphi 0, %s138
      %s140 = sphi 0, %s138
      %s141 = sphi 0, %s140
      %s155 = sphi 0, %s141
      %s159 = sphi 0, %s159
      %s161 = sphi 0, %s159
      %s162 = sphi 0, %s161
      %s176 = sphi 0, %s162
      %s182 = sphi 0, %s184
      %s185 = sphi 0, %s182
      %s186 = sphi 0, %s185
      %s202 = sphi 0, %s186
    $region4: #{tpu_custom_call.1} parent=1 // loop_header_branch
      %23 = sbr.rel (%p21) target = $region8
    $region5: #{tpu_custom_call.1} parent=1 // loop_body
      %s25 = ssub.s32 %s20, 1
      %s26 = ssub.s32 %s20, 2
      %s27 = sadd.s32 %s20, 1
      %s28 = ssub.s32 %s20, %s27
      %p29 = scmp.eq.s32.totalorder %s28, 0
      %s31 = sadd.s32 %s30, 1
      %s32 = scalar_select %p29, %s30, %s31
      %p35 = pneg %p29
      %p36 = scmp.eq.s32.totalorder %s20, 1
      %p37 = por %p35, %p36
      %p38 = scmp.ne.s32.totalorder %s30, %s33
      %p39 = scmp.eq.s32.totalorder %s20, 0
      %p40 = por %p38, %p39
      %p41 = scmp.ne.s32.totalorder %s30, %s33
      %p42 = scmp.eq.s32.totalorder %s25, 1
      %p43 = por %p41, %p42
      %p44 = scmp.ne.s32.totalorder %s33, %s34
      %p45 = scmp.eq.s32.totalorder %s25, 0
      %p46 = por %p44, %p45
      %p47 = scmp.ne.s32.totalorder %s33, %s34
      %p48 = scmp.eq.s32.totalorder %s26, 1
      %p49 = por %p47, %p48
      %p51 = scmp.ne.s32.totalorder %s34, %s50
      %p52 = scmp.eq.s32.totalorder %s26, 0
      %p53 = por %p51, %p52
      %s55 = sadd.s32 %s54, 1
      %p58 = scmp.eq.s32.totalorder %s20, 1
      %p59 = scmp.ne.s32.totalorder %s54, %s56
      %p60 = scmp.eq.s32.totalorder %s20, 0
      %p61 = por %p59, %p60
      %p62 = scmp.ne.s32.totalorder %s54, %s56
      %p63 = scmp.eq.s32.totalorder %s25, 1
      %p64 = por %p62, %p63
      %p65 = scmp.ne.s32.totalorder %s56, %s57
      %p66 = scmp.eq.s32.totalorder %s25, 0
      %p67 = por %p65, %p66
      %p68 = scmp.ne.s32.totalorder %s56, %s57
      %p69 = scmp.eq.s32.totalorder %s26, 1
      %p70 = por %p68, %p69
      %p72 = scmp.ne.s32.totalorder %s57, %s71
      %p73 = scmp.eq.s32.totalorder %s26, 0
      %p74 = por %p72, %p73
      %s76 = sadd.s32 %s75, 1
      %p79 = scmp.eq.s32.totalorder %s20, 1
      %p80 = scmp.ne.s32.totalorder %s75, %s77
      %p81 = scmp.eq.s32.totalorder %s20, 0
      %p82 = por %p80, %p81
      %p83 = scmp.ne.s32.totalorder %s75, %s77
      %p84 = scmp.eq.s32.totalorder %s25, 1
      %p85 = por %p83, %p84
      %p86 = scmp.ne.s32.totalorder %s77, %s78
      %p87 = scmp.eq.s32.totalorder %s25, 0
      %p88 = por %p86, %p87
      %p89 = scmp.ne.s32.totalorder %s77, %s78
      %p90 = scmp.eq.s32.totalorder %s26, 1
      %p91 = por %p89, %p90
      %p93 = scmp.ne.s32.totalorder %s78, %s92
      %p94 = scmp.eq.s32.totalorder %s26, 0
      %p95 = por %p93, %p94
      %s97 = sadd.s32 %s96, 1
      %p100 = scmp.eq.s32.totalorder %s20, 1
      %p101 = scmp.ne.s32.totalorder %s96, %s98
      %p102 = scmp.eq.s32.totalorder %s20, 0
      %p103 = por %p101, %p102
      %p104 = scmp.ne.s32.totalorder %s96, %s98
      %p105 = scmp.eq.s32.totalorder %s25, 1
      %p106 = por %p104, %p105
      %p107 = scmp.ne.s32.totalorder %s98, %s99
      %p108 = scmp.eq.s32.totalorder %s25, 0
      %p109 = por %p107, %p108
      %p110 = scmp.ne.s32.totalorder %s98, %s99
      %p111 = scmp.eq.s32.totalorder %s26, 1
      %p112 = por %p110, %p111
      %p114 = scmp.ne.s32.totalorder %s99, %s113
      %p115 = scmp.eq.s32.totalorder %s26, 0
      %p116 = por %p114, %p115
      %s118 = sadd.s32 %s117, 1
      %p121 = scmp.eq.s32.totalorder %s20, 1
      %p122 = scmp.ne.s32.totalorder %s117, %s119
      %p123 = scmp.eq.s32.totalorder %s20, 0
      %p124 = por %p122, %p123
      %p125 = scmp.ne.s32.totalorder %s117, %s119
      %p126 = scmp.eq.s32.totalorder %s25, 1
      %p127 = por %p125, %p126
      %p128 = scmp.ne.s32.totalorder %s119, %s120
      %p129 = scmp.eq.s32.totalorder %s25, 0
      %p130 = por %p128, %p129
      %p131 = scmp.ne.s32.totalorder %s119, %s120
      %p132 = scmp.eq.s32.totalorder %s26, 1
      %p133 = por %p131, %p132
      %p135 = scmp.ne.s32.totalorder %s120, %s134
      %p136 = scmp.eq.s32.totalorder %s26, 0
      %p137 = por %p135, %p136
      %s139 = sadd.s32 %s138, 1
      %p142 = scmp.eq.s32.totalorder %s20, 1
      %p143 = scmp.ne.s32.totalorder %s138, %s140
      %p144 = scmp.eq.s32.totalorder %s20, 0
      %p145 = por %p143, %p144
      %p146 = scmp.ne.s32.totalorder %s138, %s140
      %p147 = scmp.eq.s32.totalorder %s25, 1
      %p148 = por %p146, %p147
      %p149 = scmp.ne.s32.totalorder %s140, %s141
      %p150 = scmp.eq.s32.totalorder %s25, 0
      %p151 = por %p149, %p150
      %p152 = scmp.ne.s32.totalorder %s140, %s141
      %p153 = scmp.eq.s32.totalorder %s26, 1
      %p154 = por %p152, %p153
      %p156 = scmp.ne.s32.totalorder %s141, %s155
      %p157 = scmp.eq.s32.totalorder %s26, 0
      %p158 = por %p156, %p157
      %s160 = sadd.s32 %s159, 1
      %p163 = scmp.eq.s32.totalorder %s20, 1
      %p164 = scmp.ne.s32.totalorder %s159, %s161
      %p165 = scmp.eq.s32.totalorder %s20, 0
      %p166 = por %p164, %p165
      %p167 = scmp.ne.s32.totalorder %s159, %s161
      %p168 = scmp.eq.s32.totalorder %s25, 1
      %p169 = por %p167, %p168
      %p170 = scmp.ne.s32.totalorder %s161, %s162
      %p171 = scmp.eq.s32.totalorder %s25, 0
      %p172 = por %p170, %p171
      %p173 = scmp.ne.s32.totalorder %s161, %s162
      %p174 = scmp.eq.s32.totalorder %s26, 1
      %p175 = por %p173, %p174
      %p177 = scmp.ne.s32.totalorder %s162, %s176
      %p178 = scmp.eq.s32.totalorder %s26, 0
      %p179 = por %p177, %p178
      %s180 = ssub.s32 %s20, %s27
      %p181 = scmp.eq.s32.totalorder %s180, 0
      %s183 = sadd.s32 %s182, 1
      %s184 = scalar_select %p181, %s182, %s183
      %p187 = pneg %p181
      %p188 = scmp.eq.s32.totalorder %s20, 1
      %p189 = por %p187, %p188
      %p190 = scmp.ne.s32.totalorder %s182, %s185
      %p191 = scmp.eq.s32.totalorder %s20, 0
      %p192 = por %p190, %p191
      %p193 = scmp.ne.s32.totalorder %s182, %s185
      %p194 = scmp.eq.s32.totalorder %s25, 1
      %p195 = por %p193, %p194
      %p196 = scmp.ne.s32.totalorder %s185, %s186
      %p197 = scmp.eq.s32.totalorder %s25, 0
      %p198 = por %p196, %p197
      %p199 = scmp.ne.s32.totalorder %s185, %s186
      %p200 = scmp.eq.s32.totalorder %s26, 1
      %p201 = por %p199, %p200
      %p203 = scmp.ne.s32.totalorder %s186, %s202
      %p204 = scmp.eq.s32.totalorder %s26, 0
      %p205 = por %p203, %p204
      %p206 = scmp.le.s32.totalorder 1, %s20
      %p207 = scmp.lt.s32.totalorder %s20, 3
      %p208 = pnand %p206, %p207
      %p209 = pneg %p208
      // Predicated region
      $region9: #{tpu_custom_call.1} parent=5 // pred_check
        _
      $region10: #{tpu_custom_call.1} parent=5 // pred_check_branch
        %211 = sbr.rel (%p208) target = $region12
      $region11: #{tpu_custom_call.1} parent=5 // pred_region
        %s212 = ssub.s32 %s20, 1
        // Predicated region
        $region13: #{tpu_custom_call.1} parent=11 // pred_check
          %p213 = pneg %p67
        $region14: #{tpu_custom_call.1} parent=11 // pred_check_branch
          %215 = sbr.rel (%p213) target = $region16
        $region15: #{tpu_custom_call.1} parent=11 // pred_region
          %s217 = ssub.s32 1536, 1536
          %218 = vsyncadd [#allocation8], %s217
          %s219 = sshll.u32 [#allocation7], 4
          %s220 = int_to_ptr.vmem [resolvable:$true] %s219
          %225 = dma.hbm_to_vmem [thread:$0]  %s1, 1536, %s220, [#allocation8], 64, 64, 4
        $region16: #{tpu_custom_call.1} parent=11 // pred_fallthru
          _
        // Predicated region
        $region17: #{tpu_custom_call.1} parent=11 // pred_check
          %p226 = pneg %p88
        $region18: #{tpu_custom_call.1} parent=11 // pred_check_branch
          %228 = sbr.rel (%p226) target = $region20
        $region19: #{tpu_custom_call.1} parent=11 // pred_region
          _
        $region20: #{tpu_custom_call.1} parent=11 // pred_fallthru
          _
        // Predicated region
        $region21: #{tpu_custom_call.1} parent=11 // pred_check
          %p229 = pneg %p109
        $region22: #{tpu_custom_call.1} parent=11 // pred_check_branch
          %231 = sbr.rel (%p229) target = $region24
        $region23: #{tpu_custom_call.1} parent=11 // pred_region
          _
        $region24: #{tpu_custom_call.1} parent=11 // pred_fallthru
          _
        // Predicated region
        $region25: #{tpu_custom_call.1} parent=11 // pred_check
          %p232 = pneg %p130
        $region26: #{tpu_custom_call.1} parent=11 // pred_check_branch
          %234 = sbr.rel (%p232) target = $region28
        $region27: #{tpu_custom_call.1} parent=11 // pred_region
          %s236 = ssub.s32 3072, 3072
          %237 = vsyncadd [#allocation8], %s236
          %s238 = sshll.u32 [#allocation9], 4
          %s239 = int_to_ptr.vmem [resolvable:$true] %s238
          %244 = dma.hbm_to_vmem [thread:$0]  %s4, 3072, %s239, [#allocation8], 64, 64, 4
        $region28: #{tpu_custom_call.1} parent=11 // pred_fallthru
          _
        // Predicated region
        $region29: #{tpu_custom_call.1} parent=11 // pred_check
          %p245 = pneg %p151
        $region30: #{tpu_custom_call.1} parent=11 // pred_check_branch
          %247 = sbr.rel (%p245) target = $region32
        $region31: #{tpu_custom_call.1} parent=11 // pred_region
          _
        $region32: #{tpu_custom_call.1} parent=11 // pred_fallthru
          _
        // Predicated region
        $region33: #{tpu_custom_call.1} parent=11 // pred_check
          %p248 = pneg %p172
        $region34: #{tpu_custom_call.1} parent=11 // pred_check_branch
          %250 = sbr.rel (%p248) target = $region36
        $region35: #{tpu_custom_call.1} parent=11 // pred_region
          _
        $region36: #{tpu_custom_call.1} parent=11 // pred_fallthru
          _
      $region12: #{tpu_custom_call.1} parent=5 // pred_fallthru
        _
      %p251 = scmp.lt.s32.totalorder %s20, 2
      // Predicated region
      $region37: #{tpu_custom_call.1} parent=5 // pred_check
        %p252 = pneg %p251
      $region38: #{tpu_custom_call.1} parent=5 // pred_check_branch
        %254 = sbr.rel (%p252) target = $region40
      $region39: #{tpu_custom_call.1} parent=5 // pred_region
        // Predicated region
        $region41: #{tpu_custom_call.1} parent=39 // pred_check
          %p255 = pneg %p40
        $region42: #{tpu_custom_call.1} parent=39 // pred_check_branch
          %257 = sbr.rel (%p255) target = $region44
        $region43: #{tpu_custom_call.1} parent=39 // pred_region
          %s258 = sand.u32 %s30, 1
          %s259 = scalar_lea.sflag [#allocation5], %s258
          %s260 = sand.u32 %s30, 1
          %s261 = smul.addr %s260, 16
          %s262 = scalar_lea.vmem [#allocation4], %s261
          %s264 = ssub.s32 256, 256
          %265 = vsyncadd %s259, %s264
          %s266 = smul.addr %s20, 2
          %s267 = smul.addr %s266, 128
          %s268 = scalar_lea.hbm %s0, %s267
          %s269 = sshll.u32 %s262, 4
          %s270 = int_to_ptr.vmem [resolvable:$true] %s269
          %275 = dma.hbm_to_vmem [thread:$0]  %s268, 256, %s270, %s259, 128, 128, 8
        $region44: #{tpu_custom_call.1} parent=39 // pred_fallthru
          _
      $region40: #{tpu_custom_call.1} parent=5 // pred_fallthru
        _
      %p276 = scmp.le.s32.totalorder 1, %s20
      %p277 = scmp.lt.s32.totalorder %s20, 3
      %p278 = pnand %p276, %p277
      %p279 = pneg %p278
      // Predicated region
      $region45: #{tpu_custom_call.1} parent=5 // pred_check
        _
      $region46: #{tpu_custom_call.1} parent=5 // pred_check_branch
        %281 = sbr.rel (%p278) target = $region48
      $region47: #{tpu_custom_call.1} parent=5 // pred_region
        %s282 = ssub.s32 %s20, 1
        %s283 = sand.u32 %s33, 1
        %s284 = scalar_lea.sflag [#allocation5], %s283
        %s285 = sand.u32 %s33, 1
        %s286 = smul.addr %s285, 16
        %s287 = scalar_lea.vmem [#allocation4], %s286
        // Predicated region
        $region49: #{tpu_custom_call.1} parent=47 // pred_check
          %p288 = pneg %p46
        $region50: #{tpu_custom_call.1} parent=47 // pred_check_branch
          %290 = sbr.rel (%p288) target = $region52
        $region51: #{tpu_custom_call.1} parent=47 // pred_region
          %291 = dma.done %s284, 256
        $region52: #{tpu_custom_call.1} parent=47 // pred_fallthru
          _
        // Predicated region
        $region53: #{tpu_custom_call.1} parent=47 // pred_check
          %p292 = pneg %p67
        $region54: #{tpu_custom_call.1} parent=47 // pred_check_branch
          %294 = sbr.rel (%p292) target = $region56
        $region55: #{tpu_custom_call.1} parent=47 // pred_region
          %295 = dma.done [#allocation8], 1536
        $region56: #{tpu_custom_call.1} parent=47 // pred_fallthru
          _
        // Predicated region
        $region57: #{tpu_custom_call.1} parent=47 // pred_check
          %p296 = pneg %p130
        $region58: #{tpu_custom_call.1} parent=47 // pred_check_branch
          %298 = sbr.rel (%p296) target = $region60
        $region59: #{tpu_custom_call.1} parent=47 // pred_region
          %299 = dma.done [#allocation8], 3072
        $region60: #{tpu_custom_call.1} parent=47 // pred_fallthru
          _
        %s300 = sand.u32 %s33, 1
        %s301 = scalar_lea.sflag [#allocation5], %s300
        %s302 = sand.u32 %s33, 1
        %s303 = smul.addr %s302, 16
        %s304 = scalar_lea.vmem [#allocation4], %s303
        %p305 = pneg %p46
        %p306 = pneg %p43
        %p307 = pneg %p67
        %p308 = pneg %p64
        %p309 = pneg %p88
        %p310 = pneg %p85
        %p311 = pneg %p109
        %p312 = pneg %p106
        %p313 = pneg %p130
        %p314 = pneg %p127
        %p315 = pneg %p151
        %p316 = pneg %p148
        %p317 = pneg %p172
        %p318 = pneg %p169
        %p319 = pneg %p198
        %p320 = pneg %p195
        %s321 = sand.u32 %s185, 1
        %s322 = scalar_lea.sflag [#allocation6], %s321
        %s323 = sand.u32 %s185, 1
        %s324 = smul.addr %s323, 16
        %s325 = scalar_lea.vmem [#allocation10], %s324
        %s326 = smul.u32 2, %s25
        %vm328 = vcmask 516096
        %vm329 = vsmask.f32 256
        %vm330 = vmand %vm328, %vm329
        %v331 = vld [vmem:[#allocation2] sm:$0x1]
        %v332 = vsel %vm330, 0, %v331
        %333 = vst [vmem:[#allocation2] sm:$0x1] %v332
        %vm334 = vsmask.f32 7938
        %vm335 = vmand %vm328, %vm334
        %v336 = vld [vmem:[#allocation2 + $0x8] sm:$0x1]
        %v337 = vsel %vm335, 0, %v336
        %338 = vst [vmem:[#allocation2 + $0x8] sm:$0x1] %v337
        %vm339 = vcmask 1040384
        %vm340 = vmand %vm339, %vm329
        %v341 = vld [vmem:[#allocation3] sm:$0x1]
        %v342 = vsel %vm340, 0, %v341
        %343 = vst [vmem:[#allocation3] sm:$0x1] %v342
        %vm344 = vmand %vm339, %vm334
        %v345 = vld [vmem:[#allocation3 + $0x8] sm:$0x1]
        %v346 = vsel %vm344, 0, %v345
        %347 = vst [vmem:[#allocation3 + $0x8] sm:$0x1] %v346
        %v348 = vld [vmem:[%s287] sm:$0xff]
        %v349 = vld [vmem:[%s287 + $0x8] sm:$0xff]
        %v350 = vpack.c.bf16 %v349, %v348
        %v352 = vunpack.c.l.b16 %v350
        %v353 = vunpack.c.h.b16 %v350
        %v354 = vpack.c.b16 %v352, %v352
        %v355 = vpack.c.b16 %v353, %v353
        %vm356 = vsmask.f32 4368
        %vm357 = vmor %vm329, %vm356
        %v359 = vshrl.u32 %v354, 16
        %v361 = vrot.slane %v359, 7
        %v362 = vshll.u32 %v354, 16
        %v364 = vor.u32 %v361, %v362
        %v365 = vrot.slane %v361, 4
        %v367 = vshrl.u32 %v355, 16
        %v369 = vrot.slane %v367, 7
        %v370 = vshll.u32 %v355, 16
        %v372 = vor.u32 %v369, %v370
        %v373 = vsel %vm357, %v365, %v372
        %v374 = vrot.slane %v369, 4
        %vm378 = vcmask 519168
        %vm379 = vmand %vm378, %vm334
        %v380 = vld [vmem:[#allocation2] sm:$0xf]
        %v381 = vsel %vm379, %v364, %v380
        %382 = vst [vmem:[#allocation2] sm:$0xf] %v381
        %vm383 = vcmask 519168
        %384 = vst.msk [vmem:[#allocation2 + $0x4] sm:$0xf] %vm383, %v373
        %v385 = vld [vmem:[#allocation2 + $0x8] sm:$0x1]
        %v386 = vsel %vm330, %v374, %v385
        %387 = vst [vmem:[#allocation2 + $0x8] sm:$0x1] %v386
        %v388 = vld [vmem:[#allocation2] sm:$0xf]
        %v389 = vld [vmem:[#allocation2 + $0x4] sm:$0xf]
        %v390 = vld [vmem:[#allocation7] sm:$0xf]
        %v391 = vld [vmem:[#allocation7 + $0x4] sm:$0xf]
        %v392 = vld [vmem:[#allocation7 + $0x8] sm:$0xf]
        %v393 = vld [vmem:[#allocation7 + $0xc] sm:$0xf]
        %v394 = vld [vmem:[#allocation7 + $0x10] sm:$0xf]
        %v395 = vld [vmem:[#allocation7 + $0x14] sm:$0xf]
        %v396 = vld [vmem:[#allocation7 + $0x18] sm:$0xf]
        %v397 = vld [vmem:[#allocation7 + $0x1c] sm:$0xf]
        %v398 = vld [vmem:[#allocation2 + $0x8] sm:$0x1]
        %s399 = scalar_lea.vmem [#allocation7], 32
        %v400 = vld [vmem:[%s399] sm:$0xf]
        %v401 = vld [vmem:[%s399 + $0x4] sm:$0xf]
        %v402 = vld [vmem:[%s399 + $0x8] sm:$0xf]
        %v403 = vld [vmem:[%s399 + $0xc] sm:$0xf]
        %v404 = vld [vmem:[%s399 + $0x10] sm:$0xf]
        %v405 = vld [vmem:[%s399 + $0x14] sm:$0xf]
        %v406 = vld [vmem:[%s399 + $0x18] sm:$0xf]
        %v407 = vld [vmem:[%s399 + $0x1c] sm:$0xf]
        %v411 = vunpack.c.l.b16 %v388
        %v412 = vunpack.c.l.b16 %v389
        %v413 = vunpack.c.l.b16 %v398
        %v414 = vpack.c.b16 %v412, %v411
        %v415 = vpack.c.b16 %v413, %v413
        %vm416 = vsmask.f32 7424
        %v418 = vshrl.u32 %v414, 16
        %v420 = vshll.u32 %v414, 16
        %v422 = vrot.slane %v420, 1
        %v423 = vor.u32 %v418, %v422
        %v425 = vshll.u32 %v415, 16
        %v427 = vrot.slane %v425, 1
        %v428 = vsel %vm416, %v423, %v427
        %v437 = vunpack.c.l.b16 %v400
        %v438 = vunpack.c.l.b16 %v401
        %v439 = vunpack.c.l.b16 %v402
        %v440 = vunpack.c.l.b16 %v403
        %v441 = vunpack.c.l.b16 %v404
        %v442 = vunpack.c.l.b16 %v405
        %v443 = vunpack.c.l.b16 %v406
        %v444 = vunpack.c.l.b16 %v407
        %v445 = vpack.c.b16 %v438, %v437
        %v446 = vpack.c.b16 %v440, %v439
        %v447 = vpack.c.b16 %v442, %v441
        %v448 = vpack.c.b16 %v444, %v443
        %vm453 = vcmask 523264
        %v455 = vsel %vm453, %v428, 0
        %457 = vmatprep.subr.bf16.mxu0 0
        %458 = vmatpush1.bf16.msra.mxu0 %v445
        %459 = vmatprep.subr.bf16.mxu0 0
        %460 = vmatpush1.bf16.msra.mxu0 %v446
        %461 = vmatprep.subr.bf16.mxu0 0
        %462 = vmatpush1.bf16.msra.mxu0 %v447
        %463 = vmatprep.subr.bf16.mxu0 0
        %464 = vmatpush1.bf16.msra.mxu0 %v448
        %465 = vmatprep.subr.bf16.mxu0 0
        %466 = vmatpush1.bf16.msra.mxu0 0
        %467 = vmatprep.subr.bf16.mxu0 0
        %468 = vmatpush1.bf16.msra.mxu0 0
        %469 = vmatprep.subr.bf16.mxu0 0
        %470 = vmatpush1.bf16.msra.mxu0 0
        %471 = vmatprep.subr.bf16.mxu0 0
        %472 = vmatpush1.bf16.msra.mxu0 0
        %473 = vmatprep.subr.bf16.mxu0 0
        %474 = vmatpush1.bf16.msra.mxu0 0
        %475 = vmatprep.subr.bf16.mxu0 0
        %476 = vmatpush1.bf16.msra.mxu0 0
        %477 = vmatprep.subr.bf16.mxu0 0
        %478 = vmatpush1.bf16.msra.mxu0 0
        %479 = vmatprep.subr.bf16.mxu0 0
        %480 = vmatpush1.bf16.msra.mxu0 0
        %481 = vmatprep.subr.bf16.mxu0 0
        %482 = vmatpush1.bf16.msra.mxu0 0
        %483 = vmatprep.subr.bf16.mxu0 0
        %484 = vmatpush1.bf16.msra.mxu0 0
        %485 = vmatprep.subr.bf16.mxu0 0
        %486 = vmatpush1.bf16.msra.mxu0 0
        %487 = vmatprep.subr.bf16.mxu0 0
        %488 = vmatpush1.bf16.msra.mxu0 0
        %489 = vmatprep.mubr.bf16.mxu0 0
        %490 = vmatmul.mubr.bf16.gmra.mrb[0].mxu0 %v455
        %v491 = vpop.f32.mrb[0].mxu0
        %v492 = vadd.f32 0.0, %v491
        %v493 = vpop.f32.mrb[0].mxu0
        %v494 = vpop.f32.mrb[0].mxu0
        %v495 = vadd.f32 0.0, %v494
        %v496 = vpop.f32.mrb[0].mxu0
        %497 = vdwg.mxu0
        %v506 = vunpack.c.l.b16 %v390
        %v507 = vunpack.c.l.b16 %v391
        %v508 = vunpack.c.l.b16 %v392
        %v509 = vunpack.c.l.b16 %v393
        %v510 = vunpack.c.l.b16 %v394
        %v511 = vunpack.c.l.b16 %v395
        %v512 = vunpack.c.l.b16 %v396
        %v513 = vunpack.c.l.b16 %v397
        %v514 = vpack.c.b16 %v507, %v506
        %v515 = vpack.c.b16 %v509, %v508
        %v516 = vpack.c.b16 %v511, %v510
        %v517 = vpack.c.b16 %v513, %v512
        %v522 = vsel %vm453, %v414, 0
        %524 = vmatprep.subr.bf16.mxu0 0
        %525 = vmatpush1.bf16.msra.mxu0 %v514
        %526 = vmatprep.subr.bf16.mxu0 0
        %527 = vmatpush1.bf16.msra.mxu0 %v515
        %528 = vmatprep.subr.bf16.mxu0 0
        %529 = vmatpush1.bf16.msra.mxu0 %v516
        %530 = vmatprep.subr.bf16.mxu0 0
        %531 = vmatpush1.bf16.msra.mxu0 %v517
        %532 = vmatprep.subr.bf16.mxu0 0
        %533 = vmatpush1.bf16.msra.mxu0 0
        %534 = vmatprep.subr.bf16.mxu0 0
        %535 = vmatpush1.bf16.msra.mxu0 0
        %536 = vmatprep.subr.bf16.mxu0 0
        %537 = vmatpush1.bf16.msra.mxu0 0
        %538 = vmatprep.subr.bf16.mxu0 0
        %539 = vmatpush1.bf16.msra.mxu0 0
        %540 = vmatprep.subr.bf16.mxu0 0
        %541 = vmatpush1.bf16.msra.mxu0 0
        %542 = vmatprep.subr.bf16.mxu0 0
        %543 = vmatpush1.bf16.msra.mxu0 0
        %544 = vmatprep.subr.bf16.mxu0 0
        %545 = vmatpush1.bf16.msra.mxu0 0
        %546 = vmatprep.subr.bf16.mxu0 0
        %547 = vmatpush1.bf16.msra.mxu0 0
        %548 = vmatprep.subr.bf16.mxu0 0
        %549 = vmatpush1.bf16.msra.mxu0 0
        %550 = vmatprep.subr.bf16.mxu0 0
        %551 = vmatpush1.bf16.msra.mxu0 0
        %552 = vmatprep.subr.bf16.mxu0 0
        %553 = vmatpush1.bf16.msra.mxu0 0
        %554 = vmatprep.subr.bf16.mxu0 0
        %555 = vmatpush1.bf16.msra.mxu0 0
        %556 = vmatprep.mubr.bf16.mxu0 0
        %557 = vmatmul.mubr.bf16.gmra.mrb[0].mxu0 %v522
        %v558 = vpop.f32.mrb[0].mxu0
        %v559 = vadd.f32 %v492, %v558
        %v560 = vpop.f32.mrb[0].mxu0
        %v561 = vpop.f32.mrb[0].mxu0
        %v562 = vadd.f32 %v495, %v561
        %v563 = vpop.f32.mrb[0].mxu0
        %564 = vdwg.mxu0
        %v565 = vld [vmem:[#allocation2] sm:$0xe]
        %s566 = scalar_lea.vmem [#allocation7], 64
        %v567 = vld [vmem:[%s566] sm:$0xf]
        %v568 = vld [vmem:[%s566 + $0x4] sm:$0xf]
        %v569 = vld [vmem:[%s566 + $0x8] sm:$0xf]
        %v570 = vld [vmem:[%s566 + $0xc] sm:$0xf]
        %v571 = vld [vmem:[%s566 + $0x10] sm:$0xf]
        %v572 = vld [vmem:[%s566 + $0x14] sm:$0xf]
        %v573 = vld [vmem:[%s566 + $0x18] sm:$0xf]
        %v574 = vld [vmem:[%s566 + $0x1c] sm:$0xf]
        %v576 = vunpack.c.l.b16 %v565
        %v577 = vpack.c.b16 %v412, %v576
        %vm578 = vcmask 1046528
        %v579 = vrot.slane %v577, 1
        %v580 = vrot.slane %v415, 1
        %v581 = vsel %vm578, %v579, %v580
        %v590 = vunpack.c.l.b16 %v567
        %v591 = vunpack.c.l.b16 %v568
        %v592 = vunpack.c.l.b16 %v569
        %v593 = vunpack.c.l.b16 %v570
        %v594 = vunpack.c.l.b16 %v571
        %v595 = vunpack.c.l.b16 %v572
        %v596 = vunpack.c.l.b16 %v573
        %v597 = vunpack.c.l.b16 %v574
        %v598 = vpack.c.b16 %v591, %v590
        %v599 = vpack.c.b16 %v593, %v592
        %v600 = vpack.c.b16 %v595, %v594
        %v601 = vpack.c.b16 %v597, %v596
        %v607 = vsel %vm453, %v581, 0
        %609 = vmatprep.subr.bf16.mxu0 0
        %610 = vmatpush1.bf16.msra.mxu0 %v598
        %611 = vmatprep.subr.bf16.mxu0 0
        %612 = vmatpush1.bf16.msra.mxu0 %v599
        %613 = vmatprep.subr.bf16.mxu0 0
        %614 = vmatpush1.bf16.msra.mxu0 %v600
        %615 = vmatprep.subr.bf16.mxu0 0
        %616 = vmatpush1.bf16.msra.mxu0 %v601
        %617 = vmatprep.subr.bf16.mxu0 0
        %618 = vmatpush1.bf16.msra.mxu0 0
        %619 = vmatprep.subr.bf16.mxu0 0
        %620 = vmatpush1.bf16.msra.mxu0 0
        %621 = vmatprep.subr.bf16.mxu0 0
        %622 = vmatpush1.bf16.msra.mxu0 0
        %623 = vmatprep.subr.bf16.mxu0 0
        %624 = vmatpush1.bf16.msra.mxu0 0
        %625 = vmatprep.subr.bf16.mxu0 0
        %626 = vmatpush1.bf16.msra.mxu0 0
        %627 = vmatprep.subr.bf16.mxu0 0
        %628 = vmatpush1.bf16.msra.mxu0 0
        %629 = vmatprep.subr.bf16.mxu0 0
        %630 = vmatpush1.bf16.msra.mxu0 0
        %631 = vmatprep.subr.bf16.mxu0 0
        %632 = vmatpush1.bf16.msra.mxu0 0
        %633 = vmatprep.subr.bf16.mxu0 0
        %634 = vmatpush1.bf16.msra.mxu0 0
        %635 = vmatprep.subr.bf16.mxu0 0
        %636 = vmatpush1.bf16.msra.mxu0 0
        %637 = vmatprep.subr.bf16.mxu0 0
        %638 = vmatpush1.bf16.msra.mxu0 0
        %639 = vmatprep.subr.bf16.mxu0 0
        %640 = vmatpush1.bf16.msra.mxu0 0
        %641 = vmatprep.mubr.bf16.mxu0 0
        %642 = vmatmul.mubr.bf16.gmra.mrb[0].mxu0 %v607
        %v643 = vpop.f32.mrb[0].mxu0
        %v644 = vadd.f32 0.0, %v643
        %v645 = vpop.f32.mrb[0].mxu0
        %v646 = vpop.f32.mrb[0].mxu0
        %v647 = vadd.f32 0.0, %v646
        %v648 = vpop.f32.mrb[0].mxu0
        %649 = vdwg.mxu0
        %v650 = vadd.f32 %v559, %v644
        %v651 = vadd.f32 %v562, %v647
        %v652 = vld [vmem:[%s2] sm:$0x1]
        %v654 = vlaneseq
        %v655 = vshrl.u32 %v654, 7
        %v656 = vsub.s32 0, %v655
        %v657 = vrot.slane %v652, %v656
        %v659 = vmul.f32 %v650, %v657
        %v660 = vmul.f32 %v651, %v657
        %v661 = vld [vmem:[%s3] sm:$0x1]
        %v663 = vlaneseq
        %v664 = vshrl.u32 %v663, 7
        %v665 = vsub.s32 0, %v664
        %v666 = vrot.slane %v661, %v665
        %v668 = vadd.f32 %v659, %v666
        %v669 = vadd.f32 %v660, %v666
        %v670 = vmax.f32 %v668, 0.0
        %v671 = vmax.f32 %v669, 0.0
        %v672 = vpack.c.bf16 %v671, %v670
        %v674 = vunpack.c.l.b16 %v672
        %v675 = vunpack.c.h.b16 %v672
        %v676 = vpack.c.b16 %v674, %v674
        %v677 = vpack.c.b16 %v675, %v675
        %v679 = vshrl.u32 %v676, 16
        %v681 = vrot.slane %v679, 7
        %v682 = vshll.u32 %v676, 16
        %v684 = vor.u32 %v681, %v682
        %v685 = vrot.slane %v681, 4
        %v687 = vshrl.u32 %v677, 16
        %v689 = vrot.slane %v687, 7
        %v690 = vshll.u32 %v677, 16
        %v692 = vor.u32 %v689, %v690
        %v693 = vsel %vm357, %v685, %v692
        %v694 = vrot.slane %v689, 4
        %vm698 = vcmask 1043456
        %vm699 = vmand %vm698, %vm334
        %v700 = vld [vmem:[#allocation3] sm:$0xf]
        %v701 = vsel %vm699, %v684, %v700
        %702 = vst [vmem:[#allocation3] sm:$0xf] %v701
        %703 = vst [vmem:[#allocation3 + $0x4] sm:$0xf] %v693
        %v704 = vld [vmem:[#allocation3 + $0x8] sm:$0x1]
        %v705 = vsel %vm340, %v694, %v704
        %706 = vst [vmem:[#allocation3 + $0x8] sm:$0x1] %v705
        %v707 = vld [vmem:[#allocation3] sm:$0xf]
        %v708 = vld [vmem:[#allocation3 + $0x4] sm:$0xf]
        %v709 = vld [vmem:[#allocation9] sm:$0xf]
        %v710 = vld [vmem:[#allocation9 + $0x4] sm:$0xf]
        %v711 = vld [vmem:[#allocation9 + $0x8] sm:$0xf]
        %v712 = vld [vmem:[#allocation9 + $0xc] sm:$0xf]
        %v713 = vld [vmem:[#allocation9 + $0x10] sm:$0xf]
        %v714 = vld [vmem:[#allocation9 + $0x14] sm:$0xf]
        %v715 = vld [vmem:[#allocation9 + $0x18] sm:$0xf]
        %v716 = vld [vmem:[#allocation9 + $0x1c] sm:$0xf]
        %v717 = vld [vmem:[#allocation9 + $0x20] sm:$0xf]
        %v718 = vld [vmem:[#allocation9 + $0x24] sm:$0xf]
        %v719 = vld [vmem:[#allocation9 + $0x28] sm:$0xf]
        %v720 = vld [vmem:[#allocation9 + $0x2c] sm:$0xf]
        %v721 = vld [vmem:[#allocation9 + $0x30] sm:$0xf]
        %v722 = vld [vmem:[#allocation9 + $0x34] sm:$0xf]
        %v723 = vld [vmem:[#allocation9 + $0x38] sm:$0xf]
        %v724 = vld [vmem:[#allocation9 + $0x3c] sm:$0xf]
        %v725 = vld [vmem:[#allocation3 + $0x8] sm:$0x1]
        %s726 = scalar_lea.vmem [#allocation9], 64
        %v727 = vld [vmem:[%s726] sm:$0xf]
        %v728 = vld [vmem:[%s726 + $0x4] sm:$0xf]
        %v729 = vld [vmem:[%s726 + $0x8] sm:$0xf]
        %v730 = vld [vmem:[%s726 + $0xc] sm:$0xf]
        %v731 = vld [vmem:[%s726 + $0x10] sm:$0xf]
        %v732 = vld [vmem:[%s726 + $0x14] sm:$0xf]
        %v733 = vld [vmem:[%s726 + $0x18] sm:$0xf]
        %v734 = vld [vmem:[%s726 + $0x1c] sm:$0xf]
        %v735 = vld [vmem:[%s726 + $0x20] sm:$0xf]
        %v736 = vld [vmem:[%s726 + $0x24] sm:$0xf]
        %v737 = vld [vmem:[%s726 + $0x28] sm:$0xf]
        %v738 = vld [vmem:[%s726 + $0x2c] sm:$0xf]
        %v739 = vld [vmem:[%s726 + $0x30] sm:$0xf]
        %v740 = vld [vmem:[%s726 + $0x34] sm:$0xf]
        %v741 = vld [vmem:[%s726 + $0x38] sm:$0xf]
        %v742 = vld [vmem:[%s726 + $0x3c] sm:$0xf]
        %v746 = vunpack.c.l.b16 %v707
        %v747 = vunpack.c.l.b16 %v708
        %v748 = vunpack.c.l.b16 %v725
        %v749 = vpack.c.b16 %v747, %v746
        %v750 = vpack.c.b16 %v748, %v748
        %v752 = vshrl.u32 %v749, 16
        %v754 = vshll.u32 %v749, 16
        %v756 = vrot.slane %v754, 1
        %v757 = vor.u32 %v752, %v756
        %v759 = vshll.u32 %v750, 16
        %v761 = vrot.slane %v759, 1
        %v762 = vsel %vm416, %v757, %v761
        %v780 = vunpack.c.l.b16 %v727
        %v781 = vunpack.c.l.b16 %v728
        %v782 = vunpack.c.l.b16 %v729
        %v783 = vunpack.c.l.b16 %v730
        %v784 = vunpack.c.l.b16 %v731
        %v785 = vunpack.c.l.b16 %v732
        %v786 = vunpack.c.l.b16 %v733
        %v787 = vunpack.c.l.b16 %v734
        %v788 = vunpack.c.l.b16 %v735
        %v789 = vunpack.c.l.b16 %v736
        %v790 = vunpack.c.l.b16 %v737
        %v791 = vunpack.c.l.b16 %v738
        %v792 = vunpack.c.l.b16 %v739
        %v793 = vunpack.c.l.b16 %v740
        %v794 = vunpack.c.l.b16 %v741
        %v795 = vunpack.c.l.b16 %v742
        %v796 = vpack.c.b16 %v781, %v780
        %v797 = vpack.c.b16 %v783, %v782
        %v798 = vpack.c.b16 %v785, %v784
        %v799 = vpack.c.b16 %v787, %v786
        %v800 = vpack.c.b16 %v789, %v788
        %v801 = vpack.c.b16 %v791, %v790
        %v802 = vpack.c.b16 %v793, %v792
        %v803 = vpack.c.b16 %v795, %v794
        %812 = vmatprep.subr.bf16.mxu0 0
        %813 = vmatpush1.bf16.msra.mxu0 %v796
        %814 = vmatprep.subr.bf16.mxu0 0
        %815 = vmatpush1.bf16.msra.mxu0 %v797
        %816 = vmatprep.subr.bf16.mxu0 0
        %817 = vmatpush1.bf16.msra.mxu0 %v798
        %818 = vmatprep.subr.bf16.mxu0 0
        %819 = vmatpush1.bf16.msra.mxu0 %v799
        %820 = vmatprep.subr.bf16.mxu0 0
        %821 = vmatpush1.bf16.msra.mxu0 %v800
        %822 = vmatprep.subr.bf16.mxu0 0
        %823 = vmatpush1.bf16.msra.mxu0 %v801
        %824 = vmatprep.subr.bf16.mxu0 0
        %825 = vmatpush1.bf16.msra.mxu0 %v802
        %826 = vmatprep.subr.bf16.mxu0 0
        %827 = vmatpush1.bf16.msra.mxu0 %v803
        %828 = vmatprep.subr.bf16.mxu0 0
        %829 = vmatpush1.bf16.msra.mxu0 0
        %830 = vmatprep.subr.bf16.mxu0 0
        %831 = vmatpush1.bf16.msra.mxu0 0
        %832 = vmatprep.subr.bf16.mxu0 0
        %833 = vmatpush1.bf16.msra.mxu0 0
        %834 = vmatprep.subr.bf16.mxu0 0
        %835 = vmatpush1.bf16.msra.mxu0 0
        %836 = vmatprep.subr.bf16.mxu0 0
        %837 = vmatpush1.bf16.msra.mxu0 0
        %838 = vmatprep.subr.bf16.mxu0 0
        %839 = vmatpush1.bf16.msra.mxu0 0
        %840 = vmatprep.subr.bf16.mxu0 0
        %841 = vmatpush1.bf16.msra.mxu0 0
        %842 = vmatprep.subr.bf16.mxu0 0
        %843 = vmatpush1.bf16.msra.mxu0 0
        %844 = vmatprep.mubr.bf16.mxu0 0
        %845 = vmatmul.mubr.bf16.gmra.mrb[0].mxu0 %v762
        %v846 = vpop.f32.mrb[0].mxu0
        %v847 = vadd.f32 0.0, %v846
        %v848 = vpop.f32.mrb[0].mxu0
        %v849 = vpop.f32.mrb[0].mxu0
        %v850 = vadd.f32 0.0, %v849
        %v851 = vpop.f32.mrb[0].mxu0
        %852 = vdwg.mxu0
        %v870 = vunpack.c.l.b16 %v709
        %v871 = vunpack.c.l.b16 %v710
        %v872 = vunpack.c.l.b16 %v711
        %v873 = vunpack.c.l.b16 %v712
        %v874 = vunpack.c.l.b16 %v713
        %v875 = vunpack.c.l.b16 %v714
        %v876 = vunpack.c.l.b16 %v715
        %v877 = vunpack.c.l.b16 %v716
        %v878 = vunpack.c.l.b16 %v717
        %v879 = vunpack.c.l.b16 %v718
        %v880 = vunpack.c.l.b16 %v719
        %v881 = vunpack.c.l.b16 %v720
        %v882 = vunpack.c.l.b16 %v721
        %v883 = vunpack.c.l.b16 %v722
        %v884 = vunpack.c.l.b16 %v723
        %v885 = vunpack.c.l.b16 %v724
        %v886 = vpack.c.b16 %v871, %v870
        %v887 = vpack.c.b16 %v873, %v872
        %v888 = vpack.c.b16 %v875, %v874
        %v889 = vpack.c.b16 %v877, %v876
        %v890 = vpack.c.b16 %v879, %v878
        %v891 = vpack.c.b16 %v881, %v880
        %v892 = vpack.c.b16 %v883, %v882
        %v893 = vpack.c.b16 %v885, %v884
        %902 = vmatprep.subr.bf16.mxu0 0
        %903 = vmatpush1.bf16.msra.mxu0 %v886
        %904 = vmatprep.subr.bf16.mxu0 0
        %905 = vmatpush1.bf16.msra.mxu0 %v887
        %906 = vmatprep.subr.bf16.mxu0 0
        %907 = vmatpush1.bf16.msra.mxu0 %v888
        %908 = vmatprep.subr.bf16.mxu0 0
        %909 = vmatpush1.bf16.msra.mxu0 %v889
        %910 = vmatprep.subr.bf16.mxu0 0
        %911 = vmatpush1.bf16.msra.mxu0 %v890
        %912 = vmatprep.subr.bf16.mxu0 0
        %913 = vmatpush1.bf16.msra.mxu0 %v891
        %914 = vmatprep.subr.bf16.mxu0 0
        %915 = vmatpush1.bf16.msra.mxu0 %v892
        %916 = vmatprep.subr.bf16.mxu0 0
        %917 = vmatpush1.bf16.msra.mxu0 %v893
        %918 = vmatprep.subr.bf16.mxu0 0
        %919 = vmatpush1.bf16.msra.mxu0 0
        %920 = vmatprep.subr.bf16.mxu0 0
        %921 = vmatpush1.bf16.msra.mxu0 0
        %922 = vmatprep.subr.bf16.mxu0 0
        %923 = vmatpush1.bf16.msra.mxu0 0
        %924 = vmatprep.subr.bf16.mxu0 0
        %925 = vmatpush1.bf16.msra.mxu0 0
        %926 = vmatprep.subr.bf16.mxu0 0
        %927 = vmatpush1.bf16.msra.mxu0 0
        %928 = vmatprep.subr.bf16.mxu0 0
        %929 = vmatpush1.bf16.msra.mxu0 0
        %930 = vmatprep.subr.bf16.mxu0 0
        %931 = vmatpush1.bf16.msra.mxu0 0
        %932 = vmatprep.subr.bf16.mxu0 0
        %933 = vmatpush1.bf16.msra.mxu0 0
        %934 = vmatprep.mubr.bf16.mxu0 0
        %935 = vmatmul.mubr.bf16.gmra.mrb[0].mxu0 %v749
        %v936 = vpop.f32.mrb[0].mxu0
        %v937 = vadd.f32 %v847, %v936
        %v938 = vpop.f32.mrb[0].mxu0
        %v939 = vpop.f32.mrb[0].mxu0
        %v940 = vadd.f32 %v850, %v939
        %v941 = vpop.f32.mrb[0].mxu0
        %942 = vdwg.mxu0
        %v943 = vld [vmem:[#allocation3] sm:$0xe]
        %s944 = scalar_lea.vmem [#allocation9], 128
        %v945 = vld [vmem:[%s944] sm:$0xf]
        %v946 = vld [vmem:[%s944 + $0x4] sm:$0xf]
        %v947 = vld [vmem:[%s944 + $0x8] sm:$0xf]
        %v948 = vld [vmem:[%s944 + $0xc] sm:$0xf]
        %v949 = vld [vmem:[%s944 + $0x10] sm:$0xf]
        %v950 = vld [vmem:[%s944 + $0x14] sm:$0xf]
        %v951 = vld [vmem:[%s944 + $0x18] sm:$0xf]
        %v952 = vld [vmem:[%s944 + $0x1c] sm:$0xf]
        %v953 = vld [vmem:[%s944 + $0x20] sm:$0xf]
        %v954 = vld [vmem:[%s944 + $0x24] sm:$0xf]
        %v955 = vld [vmem:[%s944 + $0x28] sm:$0xf]
        %v956 = vld [vmem:[%s944 + $0x2c] sm:$0xf]
        %v957 = vld [vmem:[%s944 + $0x30] sm:$0xf]
        %v958 = vld [vmem:[%s944 + $0x34] sm:$0xf]
        %v959 = vld [vmem:[%s944 + $0x38] sm:$0xf]
        %v960 = vld [vmem:[%s944 + $0x3c] sm:$0xf]
        %v962 = vunpack.c.l.b16 %v943
        %v963 = vpack.c.b16 %v747, %v962
        %v964 = vrot.slane %v963, 1
        %v965 = vrot.slane %v750, 1
        %v966 = vsel %vm578, %v964, %v965
        %v984 = vunpack.c.l.b16 %v945
        %v985 = vunpack.c.l.b16 %v946
        %v986 = vunpack.c.l.b16 %v947
        %v987 = vunpack.c.l.b16 %v948
        %v988 = vunpack.c.l.b16 %v949
        %v989 = vunpack.c.l.b16 %v950
        %v990 = vunpack.c.l.b16 %v951
        %v991 = vunpack.c.l.b16 %v952
        %v992 = vunpack.c.l.b16 %v953
        %v993 = vunpack.c.l.b16 %v954
        %v994 = vunpack.c.l.b16 %v955
        %v995 = vunpack.c.l.b16 %v956
        %v996 = vunpack.c.l.b16 %v957
        %v997 = vunpack.c.l.b16 %v958
        %v998 = vunpack.c.l.b16 %v959
        %v999 = vunpack.c.l.b16 %v960
        %v1000 = vpack.c.b16 %v985, %v984
        %v1001 = vpack.c.b16 %v987, %v986
        %v1002 = vpack.c.b16 %v989, %v988
        %v1003 = vpack.c.b16 %v991, %v990
        %v1004 = vpack.c.b16 %v993, %v992
        %v1005 = vpack.c.b16 %v995, %v994
        %v1006 = vpack.c.b16 %v997, %v996
        %v1007 = vpack.c.b16 %v999, %v998
        %1016 = vmatprep.subr.bf16.mxu0 0
        %1017 = vmatpush1.bf16.msra.mxu0 %v1000
        %1018 = vmatprep.subr.bf16.mxu0 0
        %1019 = vmatpush1.bf16.msra.mxu0 %v1001
        %1020 = vmatprep.subr.bf16.mxu0 0
        %1021 = vmatpush1.bf16.msra.mxu0 %v1002
        %1022 = vmatprep.subr.bf16.mxu0 0
        %1023 = vmatpush1.bf16.msra.mxu0 %v1003
        %1024 = vmatprep.subr.bf16.mxu0 0
        %1025 = vmatpush1.bf16.msra.mxu0 %v1004
        %1026 = vmatprep.subr.bf16.mxu0 0
        %1027 = vmatpush1.bf16.msra.mxu0 %v1005
        %1028 = vmatprep.subr.bf16.mxu0 0
        %1029 = vmatpush1.bf16.msra.mxu0 %v1006
        %1030 = vmatprep.subr.bf16.mxu0 0
        %1031 = vmatpush1.bf16.msra.mxu0 %v1007
        %1032 = vmatprep.subr.bf16.mxu0 0
        %1033 = vmatpush1.bf16.msra.mxu0 0
        %1034 = vmatprep.subr.bf16.mxu0 0
        %1035 = vmatpush1.bf16.msra.mxu0 0
        %1036 = vmatprep.subr.bf16.mxu0 0
        %1037 = vmatpush1.bf16.msra.mxu0 0
        %1038 = vmatprep.subr.bf16.mxu0 0
        %1039 = vmatpush1.bf16.msra.mxu0 0
        %1040 = vmatprep.subr.bf16.mxu0 0
        %1041 = vmatpush1.bf16.msra.mxu0 0
        %1042 = vmatprep.subr.bf16.mxu0 0
        %1043 = vmatpush1.bf16.msra.mxu0 0
        %1044 = vmatprep.subr.bf16.mxu0 0
        %1045 = vmatpush1.bf16.msra.mxu0 0
        %1046 = vmatprep.subr.bf16.mxu0 0
        %1047 = vmatpush1.bf16.msra.mxu0 0
        %1048 = vmatprep.mubr.bf16.mxu0 0
        %1049 = vmatmul.mubr.bf16.gmra.mrb[0].mxu0 %v966
        %v1050 = vpop.f32.mrb[0].mxu0
        %v1051 = vadd.f32 0.0, %v1050
        %v1052 = vpop.f32.mrb[0].mxu0
        %v1053 = vpop.f32.mrb[0].mxu0
        %v1054 = vadd.f32 0.0, %v1053
        %v1055 = vpop.f32.mrb[0].mxu0
        %1056 = vdwg.mxu0
        %v1057 = vadd.f32 %v937, %v1051
        %v1058 = vadd.f32 %v940, %v1054
        %v1059 = vld [vmem:[%s5] sm:$0x1]
        %v1061 = vlaneseq
        %v1062 = vshrl.u32 %v1061, 7
        %v1063 = vsub.s32 0, %v1062
        %v1064 = vrot.slane %v1059, %v1063
        %v1066 = vmul.f32 %v1057, %v1064
        %v1067 = vmul.f32 %v1058, %v1064
        %v1068 = vld [vmem:[%s6] sm:$0x1]
        %v1070 = vlaneseq
        %v1071 = vshrl.u32 %v1070, 7
        %v1072 = vsub.s32 0, %v1071
        %v1073 = vrot.slane %v1068, %v1072
        %v1075 = vadd.f32 %v1066, %v1073
        %v1076 = vadd.f32 %v1067, %v1073
        %v1077 = vmax.f32 %v1075, 0.0
        %v1078 = vmax.f32 %v1076, 0.0
        %1079 = vst [vmem:[%s325] sm:$0xff] %v1077
        %1080 = vst [vmem:[%s325 + $0x8] sm:$0xff] %v1078
        %s1081 = sand.u32 %s185, 1
        %s1082 = scalar_lea.sflag [#allocation6], %s1081
        %s1083 = sand.u32 %s185, 1
        %s1084 = smul.addr %s1083, 16
        %s1085 = scalar_lea.vmem [#allocation10], %s1084
        // Predicated region
        $region61: #{tpu_custom_call.1} parent=47 // pred_check
          %p1086 = pneg %p195
        $region62: #{tpu_custom_call.1} parent=47 // pred_check_branch
          %1088 = sbr.rel (%p1086) target = $region64
        $region63: #{tpu_custom_call.1} parent=47 // pred_region
          %s1089 = smul.u32 2, %s25
          %s1091 = ssub.s32 256, 256
          %1092 = vsyncadd %s1082, %s1091
          %s1093 = smul.addr %s1089, 128
          %s1094 = scalar_lea.hbm %s7, %s1093
          %s1095 = sshll.u32 %s1085, 4
          %s1096 = int_to_ptr.vmem [resolvable:$true] %s1095
          %1101 = dma.vmem_to_hbm [thread:$0]  %s1096, 256, %s1094, %s1082, 128, 128, 8
        $region64: #{tpu_custom_call.1} parent=47 // pred_fallthru
          _
      $region48: #{tpu_custom_call.1} parent=5 // pred_fallthru
        _
      %p1102 = scmp.le.s32.totalorder 2, %s20
      // Predicated region
      $region65: #{tpu_custom_call.1} parent=5 // pred_check
        %p1103 = pneg %p1102
      $region66: #{tpu_custom_call.1} parent=5 // pred_check_branch
        %1105 = sbr.rel (%p1103) target = $region68
      $region67: #{tpu_custom_call.1} parent=5 // pred_region
        %s1106 = ssub.s32 %s20, 2
        // Predicated region
        $region69: #{tpu_custom_call.1} parent=67 // pred_check
          %p1107 = pneg %p201
        $region70: #{tpu_custom_call.1} parent=67 // pred_check_branch
          %1109 = sbr.rel (%p1107) target = $region72
        $region71: #{tpu_custom_call.1} parent=67 // pred_region
          %s1110 = sand.u32 %s186, 1
          %s1111 = scalar_lea.sflag [#allocation6], %s1110
          %s1112 = sand.u32 %s186, 1
          %s1113 = smul.addr %s1112, 16
          %s1114 = scalar_lea.vmem [#allocation10], %s1113
          %1115 = dma.done %s1111, 256
        $region72: #{tpu_custom_call.1} parent=67 // pred_fallthru
          _
      $region68: #{tpu_custom_call.1} parent=5 // pred_fallthru
        _
    $region6: #{tpu_custom_call.1} parent=1 // loop_footer
      %s24 = sadd.s32 1, %s20
    $region7: #{tpu_custom_call.1} parent=1 // loop_footer_branch
      %19 = sbr.rel target = $region3
    $region8: #{tpu_custom_call.1} parent=1 // loop_exit
      _
    %1116 = vsyncpa [#allocation5], 1
    %s1117 = scalar_lea.sflag [#allocation5], 1
    %1118 = vsyncpa %s1117, 1
    %1119 = vsyncpa [#allocation8], 1
    %1120 = vsyncpa [#allocation6], 1
    %s1121 = scalar_lea.sflag [#allocation6], 1
    %1122 = vsyncpa %s1121, 1

</llo_original>
